<compile_context>
chip_gen: v5e
topology: v5e:2x2
jax: 0.10.0
libtpu: 0.0.40
codegen_flags: <defaults>
</compile_context>

<pallas_src>
import functools

import jax
import jax.numpy as jnp
from jax.experimental import pallas as pl
from jax.experimental.pallas import tpu as pltpu


def _round_up(x, m):
    return (x + m - 1) // m * m


# ----------------------------------------------------------------------------
# Fused Linear (x @ W + b) kernel: used for to_qkv (zero bias) and to_out.
# ----------------------------------------------------------------------------
def _linear_kernel(x_ref, w_ref, b_ref, o_ref):
    # MXU matmul in the operand dtype (bf16 inputs -> 2x MXU throughput on all
    # generations), accumulate in f32.
    acc = jnp.dot(x_ref[...], w_ref[...], preferred_element_type=jnp.float32)
    o_ref[...] = (acc + b_ref[...].astype(jnp.float32)).astype(o_ref.dtype)


def linear(x2d, w, b=None, *, tm_cap=256, tn_cap=1024):
    """x2d: (rows, Din) @ w: (Din, Dout) + b: (1, Dout), row/col-tiled Pallas matmul."""
    rows, din = x2d.shape
    dout = w.shape[1]
    if b is None:                      # bias=False -> zero bias (semantically identical)
        b = jnp.zeros((1, dout), x2d.dtype)

    # Big aligned row tiles; pad rows instead of forcing tiny tiles for odd B*N.
    tm = min(tm_cap, _round_up(rows, 8))
    rows_pad = _round_up(rows, tm)
    if rows_pad != rows:
        x2d = jnp.pad(x2d, ((0, rows_pad - rows), (0, 0)))

    # Tile Dout only when it is large and cleanly 128-aligned; otherwise keep the
    # whole (Din, Dout) weight resident (fits easily for ViT-sized dims; on v7x
    # large weights should be fed as bf16 and/or hit this tiled path).
    tn = tn_cap if (dout > tn_cap and dout % tn_cap == 0) else dout

    itemsize = jnp.dtype(x2d.dtype).itemsize
    cost = pl.CostEstimate(
        flops=2 * rows_pad * din * dout,
        transcendentals=0,
        bytes_accessed=(rows_pad * din + din * dout + rows_pad * dout) * itemsize,
    )

    out = pl.pallas_call(
        _linear_kernel,
        out_shape=jax.ShapeDtypeStruct((rows_pad, dout), x2d.dtype),
        grid_spec=pltpu.PrefetchScalarGridSpec(
            num_scalar_prefetch=0,
            grid=(rows_pad // tm, dout // tn),
            in_specs=[
                pl.BlockSpec((tm, din), lambda i, j: (i, 0)),   # activation row tile
                pl.BlockSpec((din, tn), lambda i, j: (0, j)),   # weight (resident per j)
                pl.BlockSpec((1, tn), lambda i, j: (0, j)),     # bias
            ],
            out_specs=pl.BlockSpec((tm, tn), lambda i, j: (i, j)),
        ),
        compiler_params=pltpu.CompilerParams(
            dimension_semantics=("parallel", "parallel"),
            vmem_limit_bytes=48 * 1024 * 1024,
        ),
        cost_estimate=cost,
    )(x2d, w, b)
    return out[:rows]


# ----------------------------------------------------------------------------
# Flash attention kernel: softmax(q k^T * scale) v with online (single-pass) softmax.
# ----------------------------------------------------------------------------
def _flash_attn_kernel(q_ref, k_ref, v_ref, o_ref, m_sc, l_sc, acc_sc,
                       *, scale, n_valid, block_k, needs_mask):
    ki = pl.program_id(2)

    @pl.when(ki == 0)
    def _():
        m_sc[...] = jnp.full_like(m_sc, -jnp.inf)
        l_sc[...] = jnp.zeros_like(l_sc)
        acc_sc[...] = jnp.zeros_like(acc_sc)

    q = q_ref[0]                                            # (tq, d)
    k = k_ref[0]                                            # (tk, d)
    # scores in f32 regardless of input dtype (statistics stay f32 on v5e too)
    s = jax.lax.dot_general(q, k, (((1,), (1,)), ((), ())),
                            preferred_element_type=jnp.float32) * scale  # (tq, tk)
    if needs_mask:  # static: only emitted when the seq length was padded
        col = ki * block_k + jax.lax.broadcasted_iota(jnp.int32, s.shape, 1)
        s = jnp.where(col < n_valid, s, -jnp.inf)

    m_prev = m_sc[...]                                      # (tq, 1)
    m_new = jnp.maximum(m_prev, s.max(axis=-1, keepdims=True))
    alpha = jnp.exp(m_prev - m_new)
    p = jnp.exp(s - m_new)
    l_sc[...] = alpha * l_sc[...] + p.sum(axis=-1, keepdims=True)
    acc_sc[...] = alpha * acc_sc[...] + jnp.dot(
        p.astype(v_ref.dtype), v_ref[0], preferred_element_type=jnp.float32)
    m_sc[...] = m_new

    @pl.when(ki == pl.num_programs(2) - 1)
    def _():
        o_ref[0] = (acc_sc[...] * pl.reciprocal(l_sc[...], approx=False)
                    ).astype(o_ref.dtype)


def flash_attention(q, k, v, *, scale, block_cap=256):
    """q, k, v: (B*H, N, Dh) -> (B*H, N, Dh) = softmax(q k^T * scale) @ v."""
    bh, n, dh = q.shape
    blk = min(block_cap, _round_up(n, 8))
    n_pad = _round_up(n, blk)
    if n_pad != n:
        pad = ((0, 0), (0, n_pad - n), (0, 0))
        q, k, v = jnp.pad(q, pad), jnp.pad(k, pad), jnp.pad(v, pad)

    itemsize = jnp.dtype(q.dtype).itemsize
    cost = pl.CostEstimate(
        flops=4 * bh * n_pad * n_pad * dh,
        transcendentals=bh * n_pad * n_pad,
        bytes_accessed=4 * bh * n_pad * dh * itemsize,
    )
    kern = functools.partial(_flash_attn_kernel, scale=scale, n_valid=n,
                             block_k=blk, needs_mask=(n_pad != n))

    out = pl.pallas_call(
        kern,
        out_shape=jax.ShapeDtypeStruct((bh, n_pad, dh), q.dtype),
        grid_spec=pltpu.PrefetchScalarGridSpec(
            num_scalar_prefetch=0,
            grid=(bh, n_pad // blk, n_pad // blk),
            in_specs=[
                pl.BlockSpec((1, blk, dh), lambda b, qi, ki: (b, qi, 0)),  # q
                pl.BlockSpec((1, blk, dh), lambda b, qi, ki: (b, ki, 0)),  # k
                pl.BlockSpec((1, blk, dh), lambda b, qi, ki: (b, ki, 0)),  # v
            ],
            out_specs=pl.BlockSpec((1, blk, dh), lambda b, qi, ki: (b, qi, 0)),
            scratch_shapes=[
                pltpu.VMEM((blk, 1), jnp.float32),   # running max m
                pltpu.VMEM((blk, 1), jnp.float32),   # running denom l
                pltpu.VMEM((blk, dh), jnp.float32),  # output accumulator
            ],
        ),
        compiler_params=pltpu.CompilerParams(
            dimension_semantics=("parallel", "parallel", "arbitrary")),
        cost_estimate=cost,
    )(q, k, v)
    return out[:, :n]


# ----------------------------------------------------------------------------
# Full Attention.forward
# ----------------------------------------------------------------------------
def attention_forward(x, w_qkv, w_out, b_out, *, heads, dim_head):
    B, N, D = x.shape
    inner = heads * dim_head
    scale = dim_head ** (-0.5)
    project_out = not (heads == 1 and dim_head == D)

    # to_qkv (Linear, bias=False)
    qkv = linear(x.reshape(B * N, D), w_qkv)                     # (B*N, 3*inner)
    qkv = qkv.reshape(B, N, 3, heads, dim_head)
    qkv = qkv.transpose(2, 0, 3, 1, 4).reshape(3, B * heads, N, dim_head)
    q, k, v = qkv[0], qkv[1], qkv[2]

    # scaled dot-product attention (flash / online softmax)
    out = flash_attention(q, k, v, scale=scale)                  # (B*H, N, dim_head)
    out = out.reshape(B, heads, N, dim_head).transpose(0, 2, 1, 3).reshape(B, N, inner)

    # to_out: Linear(inner, dim) + Dropout(p=0.0) == identity in forward
    if project_out:
        out = linear(out.reshape(B * N, inner), w_out, b_out).reshape(B, N, D)
    return out


# Pure-JAX reference (mirrors the PyTorch module exactly).
def attention_ref(x, w_qkv, w_out, b_out, *, heads, dim_head):
    B, N, D = x.shape
    inner = heads * dim_head
    scale = dim_head ** (-0.5)
    qkv = x @ w_qkv
    q, k, v = jnp.split(qkv, 3, axis=-1)

    def split_heads(t):
        return t.reshape(B, N, heads, dim_head).transpose(0, 2, 1, 3)

    q, k, v = map(split_heads, (q, k, v))
    dots = jnp.einsum('bhid,bhjd->bhij', q, k) * scale
    attn = jax.nn.softmax(dots, axis=-1)
    out = jnp.einsum('bhij,bhjd->bhid', attn, v)
    out = out.transpose(0, 2, 1, 3).reshape(B, N, inner)
    if not (heads == 1 and dim_head == D):
        out = out @ w_out + b_out
    return out


if __name__ == "__main__":
    # Small shapes consistent with the module: batch=2, seq=8, dim=32,
    # heads=4, dim_head=8 -> inner_dim=32, project_out=True.
    B, N, D = 2, 8, 32
    heads, dim_head = 4, 8
    inner = heads * dim_head

    key = jax.random.PRNGKey(0)
    kx, kq, ko, kb = jax.random.split(key, 4)

    x = jax.random.normal(kx, (B, N, D), dtype=jnp.float32)
    # nn.Linear stores (out, in); we keep (in, out) with identical semantics.
    w_qkv = jax.random.normal(kq, (D, 3 * inner), dtype=jnp.float32) * (D ** -0.5)
    w_out = jax.random.normal(ko, (inner, D), dtype=jnp.float32) * (inner ** -0.5)
    b_out = jax.random.normal(kb, (1, D), dtype=jnp.float32) * 0.01

    out = attention_forward(x, w_qkv, w_out, b_out, heads=heads, dim_head=dim_head)
    out = jax.block_until_ready(out)

    ref = attention_ref(x, w_qkv, w_out, b_out, heads=heads, dim_head=dim_head)
    assert out.shape == (B, N, D)
    assert jnp.allclose(out, ref, atol=1e-4, rtol=1e-4), "mismatch vs reference"

    print("KERNEL_OK")
</pallas_src>

<mosaic_0001>
module attributes {stable_mosaic.version = 11 : i64} {
  func.func @_linear_kernel(%arg0: i32, %arg1: i32, %arg2: memref<16x32xf32, #tpu.memory_space<vmem>>, %arg3: memref<32x96xf32, #tpu.memory_space<vmem>>, %arg4: memref<1x96xf32, #tpu.memory_space<vmem>>, %arg5: memref<16x96xf32, #tpu.memory_space<vmem>>) attributes {dimension_semantics = [#tpu.dimension_semantics<parallel>, #tpu.dimension_semantics<parallel>], iteration_bounds = array<i64: 1, 1>, scalar_prefetch = 0 : i64, scratch_operands = 0 : i64, tpu.core_type = #tpu.core_type<tc>, window_params = [{transform_indices = @transform_0, window_bounds = array<i64: 16, 32>}, {transform_indices = @transform_1, window_bounds = array<i64: 32, 96>}, {transform_indices = @transform_2, window_bounds = array<i64: 1, 96>}, {transform_indices = @transform_3, window_bounds = array<i64: 16, 96>}]} {
    %c0 = arith.constant 0 : index
    %c0_0 = arith.constant 0 : index
    %0 = vector.load %arg2[%c0, %c0_0] : memref<16x32xf32, #tpu.memory_space<vmem>>, vector<16x32xf32>
    %c0_1 = arith.constant 0 : index
    %c0_2 = arith.constant 0 : index
    %1 = vector.load %arg3[%c0_1, %c0_2] : memref<32x96xf32, #tpu.memory_space<vmem>>, vector<32x96xf32>
    %cst = arith.constant dense<0.000000e+00> : vector<16x96xf32>
    %2 = tpu.matmul %0, %1, %cst {dimension_numbers = #tpu.dot_dimension_numbers<[1], [0], [0], [1], [0, 0, 1, 1], [], []>} : vector<16x32xf32>, vector<32x96xf32>, vector<16x96xf32> -> vector<16x96xf32>
    %c0_3 = arith.constant 0 : index
    %c0_4 = arith.constant 0 : index
    %3 = vector.load %arg4[%c0_3, %c0_4] : memref<1x96xf32, #tpu.memory_space<vmem>>, vector<1x96xf32>
    %4 = vector.broadcast %3 : vector<1x96xf32> to vector<16x96xf32>
    %5 = arith.addf %2, %4 : vector<16x96xf32>
    %c0_5 = arith.constant 0 : index
    %c0_6 = arith.constant 0 : index
    %6 = vector.load %arg5[%c0_5, %c0_6] : memref<16x96xf32, #tpu.memory_space<vmem>>, vector<16x96xf32>
    tpu.vector_store %arg5[%c0_5, %c0_6], %5 {strides = array<i32>} : memref<16x96xf32, #tpu.memory_space<vmem>>, vector<16x96xf32>,
    return
  }
  func.func @transform_0(%arg0: i32, %arg1: i32) -> (i32, i32) {
    %c0_i32 = arith.constant 0 : i32
    %c0_i32_0 = arith.constant 0 : i32
    return %arg0, %c0_i32 : i32, i32
  }
  func.func @transform_1(%arg0: i32, %arg1: i32) -> (i32, i32) {
    %c0_i32 = arith.constant 0 : i32
    %c0_i32_0 = arith.constant 0 : i32
    return %c0_i32, %arg1 : i32, i32
  }
  func.func @transform_2(%arg0: i32, %arg1: i32) -> (i32, i32) {
    %c0_i32 = arith.constant 0 : i32
    %c0_i32_0 = arith.constant 0 : i32
    return %c0_i32, %arg1 : i32, i32
  }
  func.func @transform_3(%arg0: i32, %arg1: i32) -> (i32, i32) {
    %c0_i32 = arith.constant 0 : i32
    return %arg0, %arg1 : i32, i32
  }
}

</mosaic_0001>

<llo_original>
// kernel: tpu_custom_call.1
$region0: #{tpu_custom_call.1}
  #allocation0 [shape = 'u32[]', space=smem, size = 0x4, offset = 0x4, fixed_abs, tag = 'smem constant byte address 0x4 - core index']
  #allocation1 [shape = 'u32[72,128]{1,0:T(1,128)}', space=vmem, size = 0x9000, scoped, tag = 'internal scratch']
  %s0 = inlined_call_operand.hbm [shape: f32[16,32], index: 0, kind: input, shape index: {}]
  %s1 = inlined_call_operand.hbm [shape: f32[32,96], index: 1, kind: input, shape index: {}]
  %s2 = inlined_call_operand.vmem [shape: f32[1,96], index: 2, kind: input, shape index: {}]
  %s3 = inlined_call_operand.hbm [shape: f32[16,96], index: 3, kind: output, shape index: {}]
  %s4 = sld [smem:[#allocation0]]
  $region30: #{tpu_custom_call.1} parent=0
    _
  %s6 = ssub.s32 1, %s4
  %s7 = scalar_select 0, %s6, %s4
  $region1: #{tpu_custom_call.1} parent=0
    #allocation2 [shape = 'u8[8192]{0}', space=vmem, size = 0x2000, scoped, tag = 'input window, operand 0, single buffered']
    #allocation3 [shape = 's32[1]{0}', space=sflag, size = 0x4, scoped, tag = 'scoped memory for tpu_custom_call.1']
    #allocation4 [shape = 's32[1]{0}', space=sflag, size = 0x4, scoped, tag = 'scoped memory for tpu_custom_call.1']
    #allocation5 [shape = 'u8[16384]{0}', space=vmem, size = 0x4000, scoped, tag = 'input window, operand 1, single buffered']
    #allocation6 [shape = 's32[1]{0}', space=sflag, size = 0x4, scoped, tag = 'scoped memory for tpu_custom_call.1']
    #allocation7 [shape = 'u8[8192]{0}', space=vmem, size = 0x2000, scoped, tag = 'output window, operand 0, single buffered']
    %8 = vsyncpa [#allocation3], 0
    %9 = vsyncpa [#allocation6], 0
    %10 = vsyncpa [#allocation4], 0
    // Predicated region
    $region2: #{tpu_custom_call.1} parent=1 // pred_check
      _
    $region3: #{tpu_custom_call.1} parent=1 // pred_check_branch
      %12 = sbr.rel (0) target = $region5
    $region4: #{tpu_custom_call.1} parent=1 // pred_region
      %14 = vsyncadd [#allocation3], 0
      %s15 = sshll.u32 %s0, 4
      %s16 = int_to_ptr.hbm [resolvable:$true] %s15
      %s17 = sshll.u32 [#allocation2], 4
      %s18 = int_to_ptr.vmem [resolvable:$true] %s17
      %23 = dma.hbm_to_vmem [thread:$0]  %s16, 256, %s18, [#allocation3], 128, 128, 8
    $region5: #{tpu_custom_call.1} parent=1 // pred_fallthru
      _
    // Predicated region
    $region6: #{tpu_custom_call.1} parent=1 // pred_check
      _
    $region7: #{tpu_custom_call.1} parent=1 // pred_check_branch
      %25 = sbr.rel (0) target = $region9
    $region8: #{tpu_custom_call.1} parent=1 // pred_region
      %27 = vsyncadd [#allocation6], 0
      %s28 = sshll.u32 %s1, 4
      %s29 = int_to_ptr.hbm [resolvable:$true] %s28
      %s30 = sshll.u32 [#allocation5], 4
      %s31 = int_to_ptr.vmem [resolvable:$true] %s30
      %36 = dma.hbm_to_vmem [thread:$0]  %s29, 512, %s31, [#allocation6], 128, 128, 8
    $region9: #{tpu_custom_call.1} parent=1 // pred_fallthru
      _
    // Predicated region
    $region10: #{tpu_custom_call.1} parent=1 // pred_check
      _
    $region11: #{tpu_custom_call.1} parent=1 // pred_check_branch
      %38 = sbr.rel (0) target = $region13
    $region12: #{tpu_custom_call.1} parent=1 // pred_region
      _
    $region13: #{tpu_custom_call.1} parent=1 // pred_fallthru
      _
    // Predicated region
    $region14: #{tpu_custom_call.1} parent=1 // pred_check
      _
    $region15: #{tpu_custom_call.1} parent=1 // pred_check_branch
      %40 = sbr.rel (0) target = $region17
    $region16: #{tpu_custom_call.1} parent=1 // pred_region
      %42 = dma.done [#allocation3], 256
    $region17: #{tpu_custom_call.1} parent=1 // pred_fallthru
      _
    // Predicated region
    $region18: #{tpu_custom_call.1} parent=1 // pred_check
      _
    $region19: #{tpu_custom_call.1} parent=1 // pred_check_branch
      %44 = sbr.rel (0) target = $region21
    $region20: #{tpu_custom_call.1} parent=1 // pred_region
      %46 = dma.done [#allocation6], 512
    $region21: #{tpu_custom_call.1} parent=1 // pred_fallthru
      _
    %v47 = vld [vmem:[#allocation2] sm:$0xff]
    %v48 = vld [vmem:[#allocation2 + $0x8] sm:$0xff]
    %v49 = vld [vmem:[#allocation5] sm:$0xff]
    %v50 = vld [vmem:[#allocation5 + $0x8] sm:$0xff]
    %v51 = vld [vmem:[#allocation5 + $0x10] sm:$0xff]
    %v52 = vld [vmem:[#allocation5 + $0x18] sm:$0xff]
    %v53 = vld [vmem:[%s2] sm:$0x1]
    %v55 = vperm.slane %v53, 0
    %vm57 = vcmask 261120
    %v59 = vsel %vm57, %v47, 0
    %v62 = vsel %vm57, %v48, 0
    %64 = vmatpush.msra.mxu0 0.0
    %65 = vmatpush.msra.mxu0 0.0
    %66 = vmatpush.msra.mxu0 0.0
    %67 = vmatpush.msra.mxu0 0.0
    %68 = vmatpush.msra.mxu0 0.0
    %69 = vmatpush.msra.mxu0 0.0
    %70 = vmatpush.msra.mxu0 0.0
    %71 = vmatpush.msra.mxu0 0.0
    %72 = vmatpush.msra.mxu0 0.0
    %73 = vmatpush.msra.mxu0 0.0
    %74 = vmatpush.msra.mxu0 0.0
    %75 = vmatpush.msra.mxu0 0.0
    %76 = vmatpush.msra.mxu0 %v52
    %77 = vmatpush.msra.mxu0 %v51
    %78 = vmatpush.msra.mxu0 %v50
    %79 = vmatpush.msra.mxu0 %v49
    %80 = vmatmul.f32.gmra.mxu0 %v59
    %v81 = vpop.f32.mrf.mxu0
    %v82 = vadd.f32 %v55, %v81
    %83 = vmatmul.f32.gmra.mxu0 %v62
    %v84 = vpop.f32.mrf.mxu0
    %v85 = vadd.f32 %v55, %v84
    %86 = vdwg.mxu0
    %vm87 = vcmask 785408
    %88 = vst.msk [vmem:[#allocation7] sm:$0xff] %vm87, %v82
    %89 = vst.msk [vmem:[#allocation7 + $0x8] sm:$0xff] %vm87, %v85
    // Predicated region
    $region22: #{tpu_custom_call.1} parent=1 // pred_check
      _
    $region23: #{tpu_custom_call.1} parent=1 // pred_check_branch
      %91 = sbr.rel (0) target = $region25
    $region24: #{tpu_custom_call.1} parent=1 // pred_region
      %93 = vsyncadd [#allocation4], 0
      %s94 = sshll.u32 [#allocation7], 4
      %s95 = int_to_ptr.vmem [resolvable:$true] %s94
      %s96 = sshll.u32 %s3, 4
      %s97 = int_to_ptr.hbm [resolvable:$true] %s96
      %102 = dma.vmem_to_hbm [thread:$0]  %s95, 256, %s97, [#allocation4], 128, 128, 8
    $region25: #{tpu_custom_call.1} parent=1 // pred_fallthru
      _
    // Predicated region
    $region26: #{tpu_custom_call.1} parent=1 // pred_check
      _
    $region27: #{tpu_custom_call.1} parent=1 // pred_check_branch
      %104 = sbr.rel (0) target = $region29
    $region28: #{tpu_custom_call.1} parent=1 // pred_region
      %106 = dma.done [#allocation4], 256
    $region29: #{tpu_custom_call.1} parent=1 // pred_fallthru
      _
    %107 = vsyncpa [#allocation3], 1
    %108 = vsyncpa [#allocation6], 1
    %109 = vsyncpa [#allocation4], 1

</llo_original>
